<compile_context>
chip_gen: v7x
topology: tpu7x:2x2x1
jax: 0.10.0
libtpu: 0.0.40
codegen_flags: <defaults>
</compile_context>

<pallas_src>
import jax
import jax.numpy as jnp
from jax.experimental import pallas as pl
from jax.experimental.pallas import tpu as pltpu


def _patch_geometry(sequence_length, patch_length, patch_stride):
    num_patches = (max(sequence_length, patch_length) - patch_length) // patch_stride + 1
    new_sequence_length = patch_length + patch_stride * (num_patches - 1)
    sequence_start = sequence_length - new_sequence_length
    return num_patches, sequence_start


def patchify_ref(x, sequence_length, patch_length, patch_stride):
    """Pure-JAX reference matching torch.Tensor.unfold semantics."""
    num_patches, sequence_start = _patch_geometry(
        sequence_length, patch_length, patch_stride)
    idx = (sequence_start
           + jnp.arange(num_patches)[:, None] * patch_stride
           + jnp.arange(patch_length)[None, :])            # (P, p_len)
    return x[..., idx]                                      # (B,C,S,P,p_len)


def _divisors(n):
    small, large = [], []
    d = 1
    while d * d <= n:
        if n % d == 0:
            small.append(d)
            if d != n // d:
                large.append(n // d)
        d += 1
    return small + large[::-1]


def _choose_fold(n_rows, in_w, out_w, max_lanes=8192):
    """Smallest divisor k of n_rows making both folded widths >= 128 lanes."""
    divs = _divisors(n_rows)
    for k in divs:
        if k * in_w >= 128 and k * out_w >= 128 and k * max(in_w, out_w) <= max_lanes:
            return k
    best = 1
    for k in divs:
        if k * max(in_w, out_w) <= max_lanes:
            best = k
    return best


def _choose_row_tile(g, sublane, cap):
    """Largest divisor of g that is <= cap and a multiple of sublane (or None)."""
    best = None
    for d in _divisors(g):
        if d <= cap and d % sublane == 0 and (best is None or d > best):
            best = d
    return best


def patchify_pallas(x, sequence_length, patch_length, patch_stride,
                    *, use_pallas=None, vmem_budget_bytes=8 * 1024 * 1024):
    """x: (B, C, S, sequence_length) -> (B, C, S, num_patches, patch_length)."""
    if sequence_length <= patch_length:
        raise ValueError(
            f"Sequence length ({sequence_length}) has to be greater than the "
            f"patch length ({patch_length})")
    if x.shape[-1] != sequence_length:
        raise ValueError(
            f"Input sequence length ({x.shape[-1]}) doesn't match model "
            f"configuration ({sequence_length}).")

    num_patches, sequence_start = _patch_geometry(
        sequence_length, patch_length, patch_stride)

    B, C, S, L = x.shape
    out_cols = num_patches * patch_length
    N = B * C * S

    # Fast path: non-overlapping patches == slice + contiguous reshape.
    if patch_stride == patch_length:
        return x[..., sequence_start:].reshape(B, C, S, num_patches, patch_length)

    itemsize = jnp.dtype(x.dtype).itemsize

    # Tiny problems: fixed pallas_call/DMA setup cost dwarfs the data movement.
    if use_pallas is None:
        use_pallas = (N * L * itemsize) >= (1 << 17)
    if not use_pallas:
        return patchify_ref(x, sequence_length, patch_length, patch_stride)

    sublane = max(8, 32 // itemsize)            # f32 -> 8, bf16 -> 16, int8 -> 32

    # Fold k original rows into one kernel row so both lane dims are dense.
    k = _choose_fold(N, L, out_cols)
    G = N // k
    in_w = k * L
    out_w = k * out_cols

    # VMEM footprint per folded row: lane-padded widths, both operands.
    lanes_in = -(-in_w // 128) * 128
    lanes_out = -(-out_w // 128) * 128
    bytes_per_row = (lanes_in + lanes_out) * itemsize

    # Double-buffered budget; keep >= ~4 grid steps for megacore/pipelining.
    tile_budget = max(1, vmem_budget_bytes // (2 * bytes_per_row))
    tile_cap = min(tile_budget, max(sublane, -(-G // 4)))
    tile_cap = max(sublane, (tile_cap // sublane) * sublane)

    tile_g = _choose_row_tile(G, sublane, tile_cap)
    if tile_g is None:
        tile_g = G          # full-extent block on the row axis (always legal)

    vmem_limit = 32 * 1024 * 1024
    padded_rows = -(-tile_g // sublane) * sublane
    if 2 * padded_rows * bytes_per_row > int(0.75 * vmem_limit):
        # Would not fit a double-buffered pipeline: let XLA handle it instead.
        return patchify_ref(x, sequence_length, patch_length, patch_stride)

    # Contiguous reshape only — no jnp.pad, no trailing trim.
    x2 = x.reshape(G, in_w)

    def kernel(x_ref, o_ref):
        # x_ref: (tile_g, k*L), o_ref: (tile_g, k*out_cols).
        # Static lane-slice copies: each patch window is written directly at
        # its destination offset (no concat slab, no dynamic indexing).
        for j in range(k):
            src_base = j * L + sequence_start
            dst_base = j * out_cols
            for p in range(num_patches):
                s0 = src_base + p * patch_stride
                d0 = dst_base + p * patch_length
                o_ref[:, d0:d0 + patch_length] = x_ref[:, s0:s0 + patch_length]

    out_flat = pl.pallas_call(
        kernel,
        out_shape=jax.ShapeDtypeStruct((G, out_w), x.dtype),
        grid_spec=pl.GridSpec(
            grid=(G // tile_g,),
            in_specs=[pl.BlockSpec((tile_g, in_w), lambda i: (i, 0))],
            out_specs=pl.BlockSpec((tile_g, out_w), lambda i: (i, 0)),
        ),
        compiler_params=pltpu.CompilerParams(
            dimension_semantics=("parallel",),
            vmem_limit_bytes=vmem_limit,
        ),
    )(x2)

    # (G, k*out_cols) -> (B, C, S, P, p_len): contiguous reshape, no transpose.
    return out_flat.reshape(B, C, S, num_patches, patch_length)


if __name__ == "__main__":
    # Module config: sequence_length=18, patch_length=8, patch_stride=4
    #   -> num_patches = 3, sequence_start = 2
    sequence_length, patch_length, patch_stride = 18, 8, 4
    B, C, S = 2, 4, 3

    key = jax.random.PRNGKey(0)
    x = jax.random.normal(key, (B, C, S, sequence_length), dtype=jnp.float32)

    # Force the Pallas path even at demo size so the kernel is exercised.
    out = patchify_pallas(x, sequence_length, patch_length, patch_stride,
                          use_pallas=True)
    out = jax.block_until_ready(out)

    ref = patchify_ref(x, sequence_length, patch_length, patch_stride)
    assert out.shape == ref.shape == (B, C, S, 3, patch_length), out.shape
    assert out.dtype == x.dtype
    assert jnp.allclose(out, ref), "mismatch vs reference"

    print("KERNEL_OK")
</pallas_src>

<mosaic_0001>
module attributes {stable_mosaic.version = 11 : i64} {
  func.func @kernel(%arg0: i32, %arg1: memref<3x144xf32, #tpu.memory_space<vmem>>, %arg2: memref<3x192xf32, #tpu.memory_space<vmem>>) attributes {dimension_semantics = [#tpu.dimension_semantics<parallel>], iteration_bounds = array<i64: 1>, scalar_prefetch = 0 : i64, scratch_operands = 0 : i64, tpu.core_type = #tpu.core_type<tc>, window_params = [{transform_indices = @transform_0, window_bounds = array<i64: 3, 144>}, {transform_indices = @transform_1, window_bounds = array<i64: 3, 192>}]} {
    %c0 = arith.constant 0 : index
    %c2 = arith.constant 2 : index
    %0 = vector.load %arg1[%c0, %c2] : memref<3x144xf32, #tpu.memory_space<vmem>>, vector<3x8xf32>
    %c0_0 = arith.constant 0 : index
    %c0_1 = arith.constant 0 : index
    %1 = vector.load %arg2[%c0_0, %c0_1] : memref<3x192xf32, #tpu.memory_space<vmem>>, vector<3x8xf32>
    tpu.vector_store %arg2[%c0_0, %c0_1], %0 {strides = array<i32>} : memref<3x192xf32, #tpu.memory_space<vmem>>, vector<3x8xf32>,
    %c0_2 = arith.constant 0 : index
    %c6 = arith.constant 6 : index
    %2 = vector.load %arg1[%c0_2, %c6] : memref<3x144xf32, #tpu.memory_space<vmem>>, vector<3x8xf32>
    %c0_3 = arith.constant 0 : index
    %c8 = arith.constant 8 : index
    %3 = vector.load %arg2[%c0_3, %c8] : memref<3x192xf32, #tpu.memory_space<vmem>>, vector<3x8xf32>
    tpu.vector_store %arg2[%c0_3, %c8], %2 {strides = array<i32>} : memref<3x192xf32, #tpu.memory_space<vmem>>, vector<3x8xf32>,
    %c0_4 = arith.constant 0 : index
    %c10 = arith.constant 10 : index
    %4 = vector.load %arg1[%c0_4, %c10] : memref<3x144xf32, #tpu.memory_space<vmem>>, vector<3x8xf32>
    %c0_5 = arith.constant 0 : index
    %c16 = arith.constant 16 : index
    %5 = vector.load %arg2[%c0_5, %c16] : memref<3x192xf32, #tpu.memory_space<vmem>>, vector<3x8xf32>
    tpu.vector_store %arg2[%c0_5, %c16], %4 {strides = array<i32>} : memref<3x192xf32, #tpu.memory_space<vmem>>, vector<3x8xf32>,
    %c0_6 = arith.constant 0 : index
    %c20 = arith.constant 20 : index
    %6 = vector.load %arg1[%c0_6, %c20] : memref<3x144xf32, #tpu.memory_space<vmem>>, vector<3x8xf32>
    %c0_7 = arith.constant 0 : index
    %c24 = arith.constant 24 : index
    %7 = vector.load %arg2[%c0_7, %c24] : memref<3x192xf32, #tpu.memory_space<vmem>>, vector<3x8xf32>
    tpu.vector_store %arg2[%c0_7, %c24], %6 {strides = array<i32>} : memref<3x192xf32, #tpu.memory_space<vmem>>, vector<3x8xf32>,
    %c0_8 = arith.constant 0 : index
    %c24_9 = arith.constant 24 : index
    %8 = vector.load %arg1[%c0_8, %c24_9] : memref<3x144xf32, #tpu.memory_space<vmem>>, vector<3x8xf32>
    %c0_10 = arith.constant 0 : index
    %c32 = arith.constant 32 : index
    %9 = vector.load %arg2[%c0_10, %c32] : memref<3x192xf32, #tpu.memory_space<vmem>>, vector<3x8xf32>
    tpu.vector_store %arg2[%c0_10, %c32], %8 {strides = array<i32>} : memref<3x192xf32, #tpu.memory_space<vmem>>, vector<3x8xf32>,
    %c0_11 = arith.constant 0 : index
    %c28 = arith.constant 28 : index
    %10 = vector.load %arg1[%c0_11, %c28] : memref<3x144xf32, #tpu.memory_space<vmem>>, vector<3x8xf32>
    %c0_12 = arith.constant 0 : index
    %c40 = arith.constant 40 : index
    %11 = vector.load %arg2[%c0_12, %c40] : memref<3x192xf32, #tpu.memory_space<vmem>>, vector<3x8xf32>
    tpu.vector_store %arg2[%c0_12, %c40], %10 {strides = array<i32>} : memref<3x192xf32, #tpu.memory_space<vmem>>, vector<3x8xf32>,
    %c0_13 = arith.constant 0 : index
    %c38 = arith.constant 38 : index
    %12 = vector.load %arg1[%c0_13, %c38] : memref<3x144xf32, #tpu.memory_space<vmem>>, vector<3x8xf32>
    %c0_14 = arith.constant 0 : index
    %c48 = arith.constant 48 : index
    %13 = vector.load %arg2[%c0_14, %c48] : memref<3x192xf32, #tpu.memory_space<vmem>>, vector<3x8xf32>
    tpu.vector_store %arg2[%c0_14, %c48], %12 {strides = array<i32>} : memref<3x192xf32, #tpu.memory_space<vmem>>, vector<3x8xf32>,
    %c0_15 = arith.constant 0 : index
    %c42 = arith.constant 42 : index
    %14 = vector.load %arg1[%c0_15, %c42] : memref<3x144xf32, #tpu.memory_space<vmem>>, vector<3x8xf32>
    %c0_16 = arith.constant 0 : index
    %c56 = arith.constant 56 : index
    %15 = vector.load %arg2[%c0_16, %c56] : memref<3x192xf32, #tpu.memory_space<vmem>>, vector<3x8xf32>
    tpu.vector_store %arg2[%c0_16, %c56], %14 {strides = array<i32>} : memref<3x192xf32, #tpu.memory_space<vmem>>, vector<3x8xf32>,
    %c0_17 = arith.constant 0 : index
    %c46 = arith.constant 46 : index
    %16 = vector.load %arg1[%c0_17, %c46] : memref<3x144xf32, #tpu.memory_space<vmem>>, vector<3x8xf32>
    %c0_18 = arith.constant 0 : index
    %c64 = arith.constant 64 : index
    %17 = vector.load %arg2[%c0_18, %c64] : memref<3x192xf32, #tpu.memory_space<vmem>>, vector<3x8xf32>
    tpu.vector_store %arg2[%c0_18, %c64], %16 {strides = array<i32>} : memref<3x192xf32, #tpu.memory_space<vmem>>, vector<3x8xf32>,
    %c0_19 = arith.constant 0 : index
    %c56_20 = arith.constant 56 : index
    %18 = vector.load %arg1[%c0_19, %c56_20] : memref<3x144xf32, #tpu.memory_space<vmem>>, vector<3x8xf32>
    %c0_21 = arith.constant 0 : index
    %c72 = arith.constant 72 : index
    %19 = vector.load %arg2[%c0_21, %c72] : memref<3x192xf32, #tpu.memory_space<vmem>>, vector<3x8xf32>
    tpu.vector_store %arg2[%c0_21, %c72], %18 {strides = array<i32>} : memref<3x192xf32, #tpu.memory_space<vmem>>, vector<3x8xf32>,
    %c0_22 = arith.constant 0 : index
    %c60 = arith.constant 60 : index
    %20 = vector.load %arg1[%c0_22, %c60] : memref<3x144xf32, #tpu.memory_space<vmem>>, vector<3x8xf32>
    %c0_23 = arith.constant 0 : index
    %c80 = arith.constant 80 : index
    %21 = vector.load %arg2[%c0_23, %c80] : memref<3x192xf32, #tpu.memory_space<vmem>>, vector<3x8xf32>
    tpu.vector_store %arg2[%c0_23, %c80], %20 {strides = array<i32>} : memref<3x192xf32, #tpu.memory_space<vmem>>, vector<3x8xf32>,
    %c0_24 = arith.constant 0 : index
    %c64_25 = arith.constant 64 : index
    %22 = vector.load %arg1[%c0_24, %c64_25] : memref<3x144xf32, #tpu.memory_space<vmem>>, vector<3x8xf32>
    %c0_26 = arith.constant 0 : index
    %c88 = arith.constant 88 : index
    %23 = vector.load %arg2[%c0_26, %c88] : memref<3x192xf32, #tpu.memory_space<vmem>>, vector<3x8xf32>
    tpu.vector_store %arg2[%c0_26, %c88], %22 {strides = array<i32>} : memref<3x192xf32, #tpu.memory_space<vmem>>, vector<3x8xf32>,
    %c0_27 = arith.constant 0 : index
    %c74 = arith.constant 74 : index
    %24 = vector.load %arg1[%c0_27, %c74] : memref<3x144xf32, #tpu.memory_space<vmem>>, vector<3x8xf32>
    %c0_28 = arith.constant 0 : index
    %c96 = arith.constant 96 : index
    %25 = vector.load %arg2[%c0_28, %c96] : memref<3x192xf32, #tpu.memory_space<vmem>>, vector<3x8xf32>
    tpu.vector_store %arg2[%c0_28, %c96], %24 {strides = array<i32>} : memref<3x192xf32, #tpu.memory_space<vmem>>, vector<3x8xf32>,
    %c0_29 = arith.constant 0 : index
    %c78 = arith.constant 78 : index
    %26 = vector.load %arg1[%c0_29, %c78] : memref<3x144xf32, #tpu.memory_space<vmem>>, vector<3x8xf32>
    %c0_30 = arith.constant 0 : index
    %c104 = arith.constant 104 : index
    %27 = vector.load %arg2[%c0_30, %c104] : memref<3x192xf32, #tpu.memory_space<vmem>>, vector<3x8xf32>
    tpu.vector_store %arg2[%c0_30, %c104], %26 {strides = array<i32>} : memref<3x192xf32, #tpu.memory_space<vmem>>, vector<3x8xf32>,
    %c0_31 = arith.constant 0 : index
    %c82 = arith.constant 82 : index
    %28 = vector.load %arg1[%c0_31, %c82] : memref<3x144xf32, #tpu.memory_space<vmem>>, vector<3x8xf32>
    %c0_32 = arith.constant 0 : index
    %c112 = arith.constant 112 : index
    %29 = vector.load %arg2[%c0_32, %c112] : memref<3x192xf32, #tpu.memory_space<vmem>>, vector<3x8xf32>
    tpu.vector_store %arg2[%c0_32, %c112], %28 {strides = array<i32>} : memref<3x192xf32, #tpu.memory_space<vmem>>, vector<3x8xf32>,
    %c0_33 = arith.constant 0 : index
    %c92 = arith.constant 92 : index
    %30 = vector.load %arg1[%c0_33, %c92] : memref<3x144xf32, #tpu.memory_space<vmem>>, vector<3x8xf32>
    %c0_34 = arith.constant 0 : index
    %c120 = arith.constant 120 : index
    %31 = vector.load %arg2[%c0_34, %c120] : memref<3x192xf32, #tpu.memory_space<vmem>>, vector<3x8xf32>
    tpu.vector_store %arg2[%c0_34, %c120], %30 {strides = array<i32>} : memref<3x192xf32, #tpu.memory_space<vmem>>, vector<3x8xf32>,
    %c0_35 = arith.constant 0 : index
    %c96_36 = arith.constant 96 : index
    %32 = vector.load %arg1[%c0_35, %c96_36] : memref<3x144xf32, #tpu.memory_space<vmem>>, vector<3x8xf32>
    %c0_37 = arith.constant 0 : index
    %c128 = arith.constant 128 : index
    %33 = vector.load %arg2[%c0_37, %c128] : memref<3x192xf32, #tpu.memory_space<vmem>>, vector<3x8xf32>
    tpu.vector_store %arg2[%c0_37, %c128], %32 {strides = array<i32>} : memref<3x192xf32, #tpu.memory_space<vmem>>, vector<3x8xf32>,
    %c0_38 = arith.constant 0 : index
    %c100 = arith.constant 100 : index
    %34 = vector.load %arg1[%c0_38, %c100] : memref<3x144xf32, #tpu.memory_space<vmem>>, vector<3x8xf32>
    %c0_39 = arith.constant 0 : index
    %c136 = arith.constant 136 : index
    %35 = vector.load %arg2[%c0_39, %c136] : memref<3x192xf32, #tpu.memory_space<vmem>>, vector<3x8xf32>
    tpu.vector_store %arg2[%c0_39, %c136], %34 {strides = array<i32>} : memref<3x192xf32, #tpu.memory_space<vmem>>, vector<3x8xf32>,
    %c0_40 = arith.constant 0 : index
    %c110 = arith.constant 110 : index
    %36 = vector.load %arg1[%c0_40, %c110] : memref<3x144xf32, #tpu.memory_space<vmem>>, vector<3x8xf32>
    %c0_41 = arith.constant 0 : index
    %c144 = arith.constant 144 : index
    %37 = vector.load %arg2[%c0_41, %c144] : memref<3x192xf32, #tpu.memory_space<vmem>>, vector<3x8xf32>
    tpu.vector_store %arg2[%c0_41, %c144], %36 {strides = array<i32>} : memref<3x192xf32, #tpu.memory_space<vmem>>, vector<3x8xf32>,
    %c0_42 = arith.constant 0 : index
    %c114 = arith.constant 114 : index
    %38 = vector.load %arg1[%c0_42, %c114] : memref<3x144xf32, #tpu.memory_space<vmem>>, vector<3x8xf32>
    %c0_43 = arith.constant 0 : index
    %c152 = arith.constant 152 : index
    %39 = vector.load %arg2[%c0_43, %c152] : memref<3x192xf32, #tpu.memory_space<vmem>>, vector<3x8xf32>
    tpu.vector_store %arg2[%c0_43, %c152], %38 {strides = array<i32>} : memref<3x192xf32, #tpu.memory_space<vmem>>, vector<3x8xf32>,
    %c0_44 = arith.constant 0 : index
    %c118 = arith.constant 118 : index
    %40 = vector.load %arg1[%c0_44, %c118] : memref<3x144xf32, #tpu.memory_space<vmem>>, vector<3x8xf32>
    %c0_45 = arith.constant 0 : index
    %c160 = arith.constant 160 : index
    %41 = vector.load %arg2[%c0_45, %c160] : memref<3x192xf32, #tpu.memory_space<vmem>>, vector<3x8xf32>
    tpu.vector_store %arg2[%c0_45, %c160], %40 {strides = array<i32>} : memref<3x192xf32, #tpu.memory_space<vmem>>, vector<3x8xf32>,
    %c0_46 = arith.constant 0 : index
    %c128_47 = arith.constant 128 : index
    %42 = vector.load %arg1[%c0_46, %c128_47] : memref<3x144xf32, #tpu.memory_space<vmem>>, vector<3x8xf32>
    %c0_48 = arith.constant 0 : index
    %c168 = arith.constant 168 : index
    %43 = vector.load %arg2[%c0_48, %c168] : memref<3x192xf32, #tpu.memory_space<vmem>>, vector<3x8xf32>
    tpu.vector_store %arg2[%c0_48, %c168], %42 {strides = array<i32>} : memref<3x192xf32, #tpu.memory_space<vmem>>, vector<3x8xf32>,
    %c0_49 = arith.constant 0 : index
    %c132 = arith.constant 132 : index
    %44 = vector.load %arg1[%c0_49, %c132] : memref<3x144xf32, #tpu.memory_space<vmem>>, vector<3x8xf32>
    %c0_50 = arith.constant 0 : index
    %c176 = arith.constant 176 : index
    %45 = vector.load %arg2[%c0_50, %c176] : memref<3x192xf32, #tpu.memory_space<vmem>>, vector<3x8xf32>
    tpu.vector_store %arg2[%c0_50, %c176], %44 {strides = array<i32>} : memref<3x192xf32, #tpu.memory_space<vmem>>, vector<3x8xf32>,
    %c0_51 = arith.constant 0 : index
    %c136_52 = arith.constant 136 : index
    %46 = vector.load %arg1[%c0_51, %c136_52] : memref<3x144xf32, #tpu.memory_space<vmem>>, vector<3x8xf32>
    %c0_53 = arith.constant 0 : index
    %c184 = arith.constant 184 : index
    %47 = vector.load %arg2[%c0_53, %c184] : memref<3x192xf32, #tpu.memory_space<vmem>>, vector<3x8xf32>
    tpu.vector_store %arg2[%c0_53, %c184], %46 {strides = array<i32>} : memref<3x192xf32, #tpu.memory_space<vmem>>, vector<3x8xf32>,
    return
  }
  func.func @transform_0(%arg0: i32) -> (i32, i32) {
    %c0_i32 = arith.constant 0 : i32
    %c0_i32_0 = arith.constant 0 : i32
    return %arg0, %c0_i32 : i32, i32
  }
  func.func @transform_1(%arg0: i32) -> (i32, i32) {
    %c0_i32 = arith.constant 0 : i32
    %c0_i32_0 = arith.constant 0 : i32
    return %arg0, %c0_i32 : i32, i32
  }
}

</mosaic_0001>

<llo_original>
// kernel: tpu_custom_call.1
$region0: #{tpu_custom_call.1}
  #allocation0 [shape = 'u32[]', space=smem, size = 0x4, offset = 0x4, fixed_abs, tag = 'smem constant byte address 0x4 - core index']
  #allocation1 [shape = 'u32[144,128]{1,0:T(1,128)}', space=vmem, size = 0x12000, scoped, tag = 'internal scratch']
  %s0 = inlined_call_operand.hbm [shape: f32[3,144], index: 0, kind: input, shape index: {}]
  %s1 = inlined_call_operand.hbm [shape: f32[3,192], index: 1, kind: output, shape index: {}]
  %s2 = sld [smem:[#allocation0]]
  $region18: #{tpu_custom_call.1} parent=0
    _
  %s4 = ssub.s32 1, %s2
  %s5 = scalar_select 0, %s4, %s2
  $region1: #{tpu_custom_call.1} parent=0
    #allocation2 [shape = 'u8[4096]{0}', space=vmem, size = 0x1000, scoped, tag = 'input window, operand 0, single buffered']
    #allocation3 [shape = 's32[1]{0}', space=sflag, size = 0x4, scoped, tag = 'scoped memory for tpu_custom_call.1']
    #allocation4 [shape = 's32[1]{0}', space=sflag, size = 0x4, scoped, tag = 'scoped memory for tpu_custom_call.1']
    #allocation5 [shape = 'u8[4096]{0}', space=vmem, size = 0x1000, scoped, tag = 'output window, operand 0, single buffered']
    %6 = vsyncpa [#allocation3], 0
    %7 = vsyncpa [#allocation4], 0
    // Predicated region
    $region2: #{tpu_custom_call.1} parent=1 // pred_check
      _
    $region3: #{tpu_custom_call.1} parent=1 // pred_check_branch
      %9 = sbr.rel (0) target = $region5
    $region4: #{tpu_custom_call.1} parent=1 // pred_region
      %s11 = ssub.s32 128, 128
      %12 = vsyncadd [#allocation3], %s11
      %s14 = sshll.u32 [#allocation2], 4
      %s15 = int_to_ptr.vmem [resolvable:$true] %s14
      %17 = dma.hbm_to_vmem [thread:$0]  %s0, 128, %s15, [#allocation3]
    $region5: #{tpu_custom_call.1} parent=1 // pred_fallthru
      _
    // Predicated region
    $region6: #{tpu_custom_call.1} parent=1 // pred_check
      _
    $region7: #{tpu_custom_call.1} parent=1 // pred_check_branch
      %19 = sbr.rel (0) target = $region9
    $region8: #{tpu_custom_call.1} parent=1 // pred_region
      %20 = dma.done [#allocation3], 128
    $region9: #{tpu_custom_call.1} parent=1 // pred_fallthru
      _
    %v21 = vld [vmem:[#allocation2] sm:$0x7]
    %23 = vrot.lane.b32.xlu0 %v21, 126
    %v24 = vpop.permute.xlu0 %23
    %vm26 = vcmask 59392
    %27 = vst.msk [vmem:[#allocation5] sm:$0x7] %vm26, %v24
    %v28 = vld [vmem:[#allocation2] sm:$0x7]
    %30 = vrot.lane.b32.xlu0 %v28, 2
    %v31 = vpop.permute.xlu0 %30
    %vm33 = vcmask 124992
    %34 = vst.msk [vmem:[#allocation5] sm:$0x7] %vm33, %v31
    %v35 = vld [vmem:[#allocation2] sm:$0x7]
    %37 = vrot.lane.b32.xlu0 %v35, 6
    %v38 = vpop.permute.xlu0 %37
    %vm40 = vcmask 190592
    %41 = vst.msk [vmem:[#allocation5] sm:$0x7] %vm40, %v38
    %v42 = vld [vmem:[#allocation2] sm:$0x7]
    %44 = vrot.lane.b32.xlu0 %v42, 4
    %v45 = vpop.permute.xlu0 %44
    %vm47 = vcmask 256192
    %48 = vst.msk [vmem:[#allocation5] sm:$0x7] %vm47, %v45
    %v49 = vld [vmem:[#allocation2] sm:$0x7]
    %51 = vrot.lane.b32.xlu0 %v49, 8
    %v52 = vpop.permute.xlu0 %51
    %vm54 = vcmask 321792
    %55 = vst.msk [vmem:[#allocation5] sm:$0x7] %vm54, %v52
    %v56 = vld [vmem:[#allocation2] sm:$0x7]
    %58 = vrot.lane.b32.xlu0 %v56, 12
    %v59 = vpop.permute.xlu0 %58
    %vm61 = vcmask 387392
    %62 = vst.msk [vmem:[#allocation5] sm:$0x7] %vm61, %v59
    %v63 = vld [vmem:[#allocation2] sm:$0x7]
    %65 = vrot.lane.b32.xlu0 %v63, 10
    %v66 = vpop.permute.xlu0 %65
    %vm68 = vcmask 452992
    %69 = vst.msk [vmem:[#allocation5] sm:$0x7] %vm68, %v66
    %v70 = vld [vmem:[#allocation2] sm:$0x7]
    %72 = vrot.lane.b32.xlu0 %v70, 14
    %v73 = vpop.permute.xlu0 %72
    %vm75 = vcmask 518592
    %76 = vst.msk [vmem:[#allocation5] sm:$0x7] %vm75, %v73
    %v77 = vld [vmem:[#allocation2] sm:$0x7]
    %79 = vrot.lane.b32.xlu0 %v77, 18
    %v80 = vpop.permute.xlu0 %79
    %vm82 = vcmask 584192
    %83 = vst.msk [vmem:[#allocation5] sm:$0x7] %vm82, %v80
    %v84 = vld [vmem:[#allocation2] sm:$0x7]
    %86 = vrot.lane.b32.xlu0 %v84, 16
    %v87 = vpop.permute.xlu0 %86
    %vm89 = vcmask 649792
    %90 = vst.msk [vmem:[#allocation5] sm:$0x7] %vm89, %v87
    %v91 = vld [vmem:[#allocation2] sm:$0x7]
    %93 = vrot.lane.b32.xlu0 %v91, 20
    %v94 = vpop.permute.xlu0 %93
    %vm96 = vcmask 715392
    %97 = vst.msk [vmem:[#allocation5] sm:$0x7] %vm96, %v94
    %v98 = vld [vmem:[#allocation2] sm:$0x7]
    %100 = vrot.lane.b32.xlu0 %v98, 24
    %v101 = vpop.permute.xlu0 %100
    %vm103 = vcmask 780992
    %104 = vst.msk [vmem:[#allocation5] sm:$0x7] %vm103, %v101
    %v105 = vld [vmem:[#allocation2] sm:$0x7]
    %107 = vrot.lane.b32.xlu0 %v105, 22
    %v108 = vpop.permute.xlu0 %107
    %vm110 = vcmask 846592
    %111 = vst.msk [vmem:[#allocation5] sm:$0x7] %vm110, %v108
    %v112 = vld [vmem:[#allocation2] sm:$0x7]
    %114 = vrot.lane.b32.xlu0 %v112, 26
    %v115 = vpop.permute.xlu0 %114
    %vm117 = vcmask 912192
    %118 = vst.msk [vmem:[#allocation5] sm:$0x7] %vm117, %v115
    %v119 = vld [vmem:[#allocation2] sm:$0x7]
    %121 = vrot.lane.b32.xlu0 %v119, 30
    %v122 = vpop.permute.xlu0 %121
    %vm124 = vcmask 977792
    %125 = vst.msk [vmem:[#allocation5] sm:$0x7] %vm124, %v122
    %v126 = vld [vmem:[#allocation2] sm:$0x7]
    %128 = vrot.lane.b32.xlu0 %v126, 28
    %v129 = vpop.permute.xlu0 %128
    %vm131 = vcmask 1043392
    %132 = vst.msk [vmem:[#allocation5] sm:$0x7] %vm131, %v129
    %v133 = vld [vmem:[#allocation2] sm:$0x7]
    %135 = vrot.lane.b32.xlu0 %v133, 32
    %v136 = vpop.permute.xlu0 %135
    %138 = vst.msk [vmem:[#allocation5 + $0x4] sm:$0x7] %vm26, %v136
    %v139 = vld [vmem:[#allocation2] sm:$0x7]
    %141 = vrot.lane.b32.xlu0 %v139, 36
    %v142 = vpop.permute.xlu0 %141
    %144 = vst.msk [vmem:[#allocation5 + $0x4] sm:$0x7] %vm33, %v142
    %v145 = vld [vmem:[#allocation2] sm:$0x7]
    %147 = vrot.lane.b32.xlu0 %v145, 34
    %v148 = vpop.permute.xlu0 %147
    %150 = vst.msk [vmem:[#allocation5 + $0x4] sm:$0x7] %vm40, %v148
    %v151 = vld [vmem:[#allocation2] sm:$0x7]
    %153 = vrot.lane.b32.xlu0 %v151, 38
    %v154 = vpop.permute.xlu0 %153
    %156 = vst.msk [vmem:[#allocation5 + $0x4] sm:$0x7] %vm47, %v154
    %v157 = vld [vmem:[#allocation2] sm:$0x7]
    %159 = vrot.lane.b32.xlu0 %v157, 42
    %v160 = vpop.permute.xlu0 %159
    %162 = vst.msk [vmem:[#allocation5 + $0x4] sm:$0x7] %vm54, %v160
    %v163 = vld [vmem:[#allocation2 + $0x4] sm:$0x7]
    %165 = vrot.lane.b32.xlu0 %v163, 40
    %v166 = vpop.permute.xlu0 %165
    %168 = vst.msk [vmem:[#allocation5 + $0x4] sm:$0x7] %vm61, %v166
    %v169 = vld [vmem:[#allocation2 + $0x4] sm:$0x7]
    %171 = vrot.lane.b32.xlu0 %v169, 44
    %v172 = vpop.permute.xlu0 %171
    %174 = vst.msk [vmem:[#allocation5 + $0x4] sm:$0x7] %vm68, %v172
    %v175 = vld [vmem:[#allocation2 + $0x4] sm:$0x7]
    %177 = vrot.lane.b32.xlu0 %v175, 48
    %v178 = vpop.permute.xlu0 %177
    %180 = vst.msk [vmem:[#allocation5 + $0x4] sm:$0x7] %vm75, %v178
    // Predicated region
    $region10: #{tpu_custom_call.1} parent=1 // pred_check
      _
    $region11: #{tpu_custom_call.1} parent=1 // pred_check_branch
      %182 = sbr.rel (0) target = $region13
    $region12: #{tpu_custom_call.1} parent=1 // pred_region
      %s184 = ssub.s32 128, 128
      %185 = vsyncadd [#allocation4], %s184
      %s187 = sshll.u32 [#allocation5], 4
      %s188 = int_to_ptr.vmem [resolvable:$true] %s187
      %190 = dma.vmem_to_hbm [thread:$0]  %s188, 128, %s1, [#allocation4]
    $region13: #{tpu_custom_call.1} parent=1 // pred_fallthru
      _
    // Predicated region
    $region14: #{tpu_custom_call.1} parent=1 // pred_check
      _
    $region15: #{tpu_custom_call.1} parent=1 // pred_check_branch
      %192 = sbr.rel (0) target = $region17
    $region16: #{tpu_custom_call.1} parent=1 // pred_region
      %193 = dma.done [#allocation4], 128
    $region17: #{tpu_custom_call.1} parent=1 // pred_fallthru
      _
    %194 = vsyncpa [#allocation3], 1
    %195 = vsyncpa [#allocation4], 1

</llo_original>
